<compile_context>
chip_gen: v7x
topology: tpu7x:2x2x1
jax: 0.10.0
libtpu: 0.0.40
codegen_flags: <defaults>
</compile_context>

<pallas_src>
import jax
import jax.numpy as jnp
import numpy as np
from jax.experimental import pallas as pl
from jax.experimental.pallas import tpu as pltpu


def induced_alpha_kernel(lhs_ref, cm_ref, x_ref, alpha_ref, o_ref, acc_ref):
    # lhs_ref   : (Bp, tk)  bf16  precomputed inducers_drelu, contraction slice
    # cm_ref    : (tk, tn)  bf16  pre-transposed choosing-matrix tile (K, N_out)
    # x_ref     : (Bp, tn)  f32   input tile for the elementwise blend
    # alpha_ref : (1,  tn)  f32   alphas tile
    # o_ref     : (Bp, tn)  f32   output tile (resident across k)
    # acc_ref   : (Bp, tn)  f32   VMEM accumulator (resident across k)
    k = pl.program_id(1)

    @pl.when(k == 0)
    def _():
        acc_ref[...] = jnp.zeros_like(acc_ref)

    acc_ref[...] += jnp.dot(lhs_ref[...], cm_ref[...],
                            preferred_element_type=jnp.float32)

    @pl.when(k == pl.num_programs(1) - 1)
    def _():
        x_t = x_ref[...]                                  # (Bp, tn)
        a = alpha_ref[...]                                # (1,  tn)
        induced_relu = acc_ref[...] * x_t
        o_ref[...] = induced_relu * a + (1.0 - a) * x_t


def induced_learnable_alpha(x, alphas, inducers_mask, choosing_matrix,
                            tile_n=512, tile_k=512):
    """x: (B,C,H,W); alphas: (1,C,H,W); inducers_mask: (C,H,W); choosing_matrix: (N,N)."""
    B, C, H, W = x.shape
    N = C * H * W
    assert choosing_matrix.shape == (N, N)

    x_flat = x.reshape(B, N).astype(jnp.float32)
    mask_flat = inducers_mask.reshape(1, N).astype(jnp.float32)
    alpha_flat = alphas.reshape(1, N).astype(jnp.float32)

    # Hoisted out of the kernel: drelu + inducer mask, computed once.
    # Values are exactly {0, 1} -> bf16 cast is lossless and feeds the MXU
    # bf16 path directly.
    lhs = (mask_flat * (x_flat > 0).astype(jnp.float32)).astype(jnp.bfloat16)

    # Pre-transpose the (fixed-parameter) choosing matrix once:
    #   induced = inducers_drelu @ CM.T = inducers_drelu @ cm_t
    # {0,1}-valued -> lossless in bf16; halves the dominant HBM stream.
    cm_t = choosing_matrix.T.astype(jnp.bfloat16)

    # Pad batch to a full sublane group (8): unmasked stores, better MXU row
    # utilization. Extra rows are zeros and sliced off afterwards.
    Bp = max(8, ((B + 7) // 8) * 8)
    if Bp != B:
        pad = ((0, Bp - B), (0, 0))
        x_flat = jnp.pad(x_flat, pad)
        lhs = jnp.pad(lhs, pad)

    tn = min(tile_n, N)
    tk = min(tile_k, N)
    assert N % tn == 0 and N % tk == 0, \
        "N = C*H*W must be divisible by the output / contraction tile sizes"
    grid = (N // tn, N // tk)   # (output-tile axis j, contraction axis k)

    out_flat = pl.pallas_call(
        induced_alpha_kernel,
        out_shape=jax.ShapeDtypeStruct((Bp, N), jnp.float32),
        grid_spec=pltpu.PrefetchScalarGridSpec(
            num_scalar_prefetch=0,
            grid=grid,
            in_specs=[
                pl.BlockSpec((Bp, tk), lambda j, k: (0, k)),   # inducers_drelu (LHS)
                pl.BlockSpec((tk, tn), lambda j, k: (k, j)),   # CM^T tile (RHS)
                pl.BlockSpec((Bp, tn), lambda j, k: (0, j)),   # x output tile
                pl.BlockSpec((1, tn), lambda j, k: (0, j)),    # alphas tile
            ],
            out_specs=pl.BlockSpec((Bp, tn), lambda j, k: (0, j)),
            scratch_shapes=[pltpu.VMEM((Bp, tn), jnp.float32)],
        ),
        compiler_params=pltpu.CompilerParams(
            dimension_semantics=("parallel", "arbitrary"),
            vmem_limit_bytes=48 * 1024 * 1024,
        ),
    )(lhs, cm_t, x_flat, alpha_flat)

    return out_flat[:B].reshape(B, C, H, W)


def reference(x, alphas, inducers_mask, choosing_matrix):
    B = x.shape[0]
    N = x.size // B
    drelu = (x > 0).astype(jnp.float32)
    inducers_drelu = inducers_mask[None] * drelu
    induced = (choosing_matrix @ inducers_drelu.reshape(B, N).T).T
    induced_relu = induced.reshape(x.shape) * x
    return induced_relu * alphas + (1.0 - alphas) * x


if __name__ == "__main__":
    # Small shapes consistent with the module: NCHW input, N = C*H*W
    B, C, H, W = 2, 4, 16, 16
    N = C * H * W

    key = jax.random.PRNGKey(0)
    kx, ka, km, kc = jax.random.split(key, 4)

    x = jax.random.normal(kx, (B, C, H, W), dtype=jnp.float32)
    # Deterministic "parameters" (module stores them at __init__):
    alphas = jax.random.uniform(ka, (1, C, H, W), dtype=jnp.float32)
    inducers_mask = (jax.random.uniform(km, (C, H, W)) > 0.5).astype(jnp.float32)
    choosing_matrix = (jax.random.uniform(kc, (N, N)) > 0.995).astype(jnp.float32)

    out = induced_learnable_alpha(x, alphas, inducers_mask, choosing_matrix)
    out = jax.block_until_ready(out)

    ref = reference(x, alphas, inducers_mask, choosing_matrix)
    np.testing.assert_allclose(np.asarray(out), np.asarray(ref), rtol=1e-5, atol=1e-5)

    print("KERNEL_OK")
</pallas_src>

<mosaic_0001>
module attributes {stable_mosaic.version = 11 : i64} {
  func.func @induced_alpha_kernel(%arg0: i32, %arg1: i32, %arg2: memref<8x512xbf16, #tpu.memory_space<vmem>>, %arg3: memref<512x512xbf16, #tpu.memory_space<vmem>>, %arg4: memref<8x512xf32, #tpu.memory_space<vmem>>, %arg5: memref<1x512xf32, #tpu.memory_space<vmem>>, %arg6: memref<8x512xf32, #tpu.memory_space<vmem>>, %arg7: memref<8x512xf32, #tpu.memory_space<vmem>>) attributes {dimension_semantics = [#tpu.dimension_semantics<parallel>, #tpu.dimension_semantics<arbitrary>], iteration_bounds = array<i64: 2, 2>, scalar_prefetch = 0 : i64, scratch_operands = 1 : i64, tpu.core_type = #tpu.core_type<tc>, window_params = [{transform_indices = @transform_0, window_bounds = array<i64: 8, 512>}, {transform_indices = @transform_1, window_bounds = array<i64: 512, 512>}, {transform_indices = @transform_2, window_bounds = array<i64: 8, 512>}, {transform_indices = @transform_3, window_bounds = array<i64: 1, 512>}, {transform_indices = @transform_4, window_bounds = array<i64: 8, 512>}]} {
    %c0_i32 = arith.constant 0 : i32
    %0 = arith.cmpi eq, %arg1, %c0_i32 : i32
    %1 = arith.extui %0 : i1 to i32
    %c0_i32_0 = arith.constant 0 : i32
    %2 = arith.cmpi ne, %1, %c0_i32_0 : i32
    scf.if %2 {
      %cst_9 = arith.constant 0.000000e+00 : f32
      %12 = vector.broadcast %cst_9 : f32 to vector<8x512xf32>
      %c0_10 = arith.constant 0 : index
      %c0_11 = arith.constant 0 : index
      %13 = vector.load %arg7[%c0_10, %c0_11] : memref<8x512xf32, #tpu.memory_space<vmem>>, vector<8x512xf32>
      tpu.vector_store %arg7[%c0_10, %c0_11], %12 {strides = array<i32>} : memref<8x512xf32, #tpu.memory_space<vmem>>, vector<8x512xf32>,
    } else {
    }
    %c0 = arith.constant 0 : index
    %c0_1 = arith.constant 0 : index
    %3 = vector.load %arg7[%c0, %c0_1] : memref<8x512xf32, #tpu.memory_space<vmem>>, vector<8x512xf32>
    %c0_2 = arith.constant 0 : index
    %c0_3 = arith.constant 0 : index
    %4 = vector.load %arg2[%c0_2, %c0_3] : memref<8x512xbf16, #tpu.memory_space<vmem>>, vector<8x512xbf16>
    %c0_4 = arith.constant 0 : index
    %c0_5 = arith.constant 0 : index
    %5 = vector.load %arg3[%c0_4, %c0_5] : memref<512x512xbf16, #tpu.memory_space<vmem>>, vector<512x512xbf16>
    %cst = arith.constant dense<0.000000e+00> : vector<8x512xf32>
    %6 = tpu.matmul %4, %5, %cst {dimension_numbers = #tpu.dot_dimension_numbers<[1], [0], [0], [1], [0, 0, 1, 1], [], []>} : vector<8x512xbf16>, vector<512x512xbf16>, vector<8x512xf32> -> vector<8x512xf32>
    %7 = arith.addf %3, %6 : vector<8x512xf32>
    %c0_6 = arith.constant 0 : index
    %c0_7 = arith.constant 0 : index
    %8 = vector.load %arg7[%c0_6, %c0_7] : memref<8x512xf32, #tpu.memory_space<vmem>>, vector<8x512xf32>
    tpu.vector_store %arg7[%c0_6, %c0_7], %7 {strides = array<i32>} : memref<8x512xf32, #tpu.memory_space<vmem>>, vector<8x512xf32>,
    %c1_i32 = arith.constant 1 : i32
    %9 = arith.cmpi eq, %arg1, %c1_i32 : i32
    %10 = arith.extui %9 : i1 to i32
    %c0_i32_8 = arith.constant 0 : i32
    %11 = arith.cmpi ne, %10, %c0_i32_8 : i32
    scf.if %11 {
      %c0_9 = arith.constant 0 : index
      %c0_10 = arith.constant 0 : index
      %12 = vector.load %arg4[%c0_9, %c0_10] : memref<8x512xf32, #tpu.memory_space<vmem>>, vector<8x512xf32>
      %c0_11 = arith.constant 0 : index
      %c0_12 = arith.constant 0 : index
      %13 = vector.load %arg5[%c0_11, %c0_12] : memref<1x512xf32, #tpu.memory_space<vmem>>, vector<1x512xf32>
      %c0_13 = arith.constant 0 : index
      %c0_14 = arith.constant 0 : index
      %14 = vector.load %arg7[%c0_13, %c0_14] : memref<8x512xf32, #tpu.memory_space<vmem>>, vector<8x512xf32>
      %15 = arith.mulf %14, %12 : vector<8x512xf32>
      %16 = vector.broadcast %13 : vector<1x512xf32> to vector<8x512xf32>
      %17 = arith.mulf %15, %16 : vector<8x512xf32>
      %cst_15 = arith.constant 1.000000e+00 : f32
      %18 = vector.broadcast %cst_15 : f32 to vector<1x512xf32>
      %19 = arith.subf %18, %13 : vector<1x512xf32>
      %20 = vector.broadcast %19 : vector<1x512xf32> to vector<8x512xf32>
      %21 = arith.mulf %20, %12 : vector<8x512xf32>
      %22 = arith.addf %17, %21 : vector<8x512xf32>
      %c0_16 = arith.constant 0 : index
      %c0_17 = arith.constant 0 : index
      %23 = vector.load %arg6[%c0_16, %c0_17] : memref<8x512xf32, #tpu.memory_space<vmem>>, vector<8x512xf32>
      tpu.vector_store %arg6[%c0_16, %c0_17], %22 {strides = array<i32>} : memref<8x512xf32, #tpu.memory_space<vmem>>, vector<8x512xf32>,
    } else {
    }
    return
  }
  func.func @transform_0(%arg0: i32, %arg1: i32) -> (i32, i32) {
    %c0_i32 = arith.constant 0 : i32
    %c0_i32_0 = arith.constant 0 : i32
    return %c0_i32, %arg1 : i32, i32
  }
  func.func @transform_1(%arg0: i32, %arg1: i32) -> (i32, i32) {
    %c0_i32 = arith.constant 0 : i32
    return %arg1, %arg0 : i32, i32
  }
  func.func @transform_2(%arg0: i32, %arg1: i32) -> (i32, i32) {
    %c0_i32 = arith.constant 0 : i32
    %c0_i32_0 = arith.constant 0 : i32
    return %c0_i32, %arg0 : i32, i32
  }
  func.func @transform_3(%arg0: i32, %arg1: i32) -> (i32, i32) {
    %c0_i32 = arith.constant 0 : i32
    %c0_i32_0 = arith.constant 0 : i32
    return %c0_i32, %arg0 : i32, i32
  }
  func.func @transform_4(%arg0: i32, %arg1: i32) -> (i32, i32) {
    %c0_i32 = arith.constant 0 : i32
    %c0_i32_0 = arith.constant 0 : i32
    return %c0_i32, %arg0 : i32, i32
  }
}

</mosaic_0001>

<llo_original>
// kernel: tpu_custom_call.1
$region0: #{tpu_custom_call.1}
  #allocation0 [shape = 'u32[]', space=smem, size = 0x4, offset = 0x4, fixed_abs, tag = 'smem constant byte address 0x4 - core index']
  #allocation1 [shape = 'u32[144,128]{1,0:T(1,128)}', space=vmem, size = 0x12000, scoped, tag = 'internal scratch']
  #allocation2 [shape = 'f32[8,512]{1,0:T(8,128)}', space=vmem, size = 0x4000, scoped, tag = 'scratch operand']
  %s0 = inlined_call_operand.hbm [shape: bf16[8,1024], index: 0, kind: input, shape index: {}]
  %s1 = inlined_call_operand.hbm [shape: bf16[1024,1024], index: 1, kind: input, shape index: {}]
  %s2 = inlined_call_operand.hbm [shape: f32[8,1024], index: 2, kind: input, shape index: {}]
  %s3 = inlined_call_operand.hbm [shape: f32[1,1024], index: 3, kind: input, shape index: {}]
  %s4 = inlined_call_operand.hbm [shape: f32[8,1024], index: 4, kind: output, shape index: {}]
  %s5 = sld [smem:[#allocation0]]
  $region73: #{tpu_custom_call.1} parent=0
    _
  %s7 = ssub.s32 1, %s5
  %s8 = scalar_select 0, %s7, %s5
  $region1: #{tpu_custom_call.1} parent=0
    #allocation3 [shape = 'u8[16384]{0}', space=vmem, size = 0x4000, scoped, tag = 'input window, operand 0']
    #allocation4 [shape = 's32[2]{0}', space=sflag, size = 0x8, scoped, tag = 'scoped memory for tpu_custom_call.1']
    #allocation5 [shape = 's32[2]{0}', space=sflag, size = 0x8, scoped, tag = 'scoped memory for tpu_custom_call.1']
    #allocation6 [shape = 'u8[1048576]{0}', space=vmem, size = 0x100000, scoped, tag = 'input window, operand 1']
    #allocation7 [shape = 's32[2]{0}', space=sflag, size = 0x8, scoped, tag = 'scoped memory for tpu_custom_call.1']
    #allocation8 [shape = 'u8[32768]{0}', space=vmem, size = 0x8000, scoped, tag = 'input window, operand 2']
    #allocation9 [shape = 'u8[4096]{0}', space=vmem, size = 0x1000, scoped, tag = 'input window, operand 3']
    #allocation10 [shape = 's32[2]{0}', space=sflag, size = 0x8, scoped, tag = 'scoped memory for tpu_custom_call.1']
    #allocation11 [shape = 'u8[32768]{0}', space=vmem, size = 0x8000, scoped, tag = 'output window, operand 0']
    %9 = vsyncpa [#allocation4], 0
    %s10 = scalar_lea.sflag [#allocation4], 1
    %11 = vsyncpa %s10, 0
    %12 = vsyncpa [#allocation7], 0
    %s13 = scalar_lea.sflag [#allocation7], 1
    %14 = vsyncpa %s13, 0
    %15 = vsyncpa [#allocation10], 0
    %s16 = scalar_lea.sflag [#allocation10], 1
    %17 = vsyncpa %s16, 0
    %18 = vsyncpa [#allocation5], 0
    %s19 = scalar_lea.sflag [#allocation5], 1
    %20 = vsyncpa %s19, 0
    loop: start=0, step=1, limit=6
    $region2: #{tpu_custom_call.1} parent=1 // loop_pre_header
      _
    $region3: #{tpu_custom_call.1} parent=1 // loop_header
      %s22 = sphi 0, %s26
      %p23 = scmp.ge.s32.totalorder %s22, 6
      %s29 = sphi 0, %s41
      %s30 = sphi 0, %s37
      %s31 = sphi 0, %s29
      %s32 = sphi 0, %s30
      %s33 = sphi 0, %s31
      %s34 = sphi 0, %s32
      %s44 = sphi 0, %s46
      %s47 = sphi 0, %s44
      %s48 = sphi 0, %s47
      %s64 = sphi 0, %s48
      %s72 = sphi 0, %s74
      %s75 = sphi 0, %s72
      %s76 = sphi 0, %s75
      %s92 = sphi 0, %s76
      %s98 = sphi 0, %s100
      %s101 = sphi 0, %s98
      %s102 = sphi 0, %s101
      %s118 = sphi 0, %s102
      %s124 = sphi 0, %s126
      %s127 = sphi 0, %s124
      %s128 = sphi 0, %s127
      %s144 = sphi 0, %s128
      %s150 = sphi 0, %s152
      %s153 = sphi 0, %s150
      %s154 = sphi 0, %s153
      %s170 = sphi 0, %s154
    $region4: #{tpu_custom_call.1} parent=1 // loop_header_branch
      %25 = sbr.rel (%p23) target = $region8
    $region5: #{tpu_custom_call.1} parent=1 // loop_body
      %s27 = ssub.s32 %s22, 1
      %s28 = ssub.s32 %s22, 2
      %s35 = sadd.s32 1, %s30
      %p36 = scmp.ge.s32.totalorder %s35, 2
      %s37 = scalar_select %p36, 0, %s35
      %s38 = sadd.s32 1, %s29
      %s39 = scalar_select %p36, %s38, %s29
      %p40 = scmp.ge.s32.totalorder %s39, 2
      %s41 = scalar_select %p40, 0, %s39
      %s42 = ssub.s32 %s30, %s37
      %p43 = scmp.eq.s32.totalorder %s42, 0
      %s45 = sadd.s32 %s44, 1
      %s46 = scalar_select %p43, %s44, %s45
      %p49 = pneg %p43
      %p50 = scmp.eq.s32.totalorder %s22, 3
      %p51 = por %p49, %p50
      %p52 = scmp.ne.s32.totalorder %s44, %s47
      %p53 = scmp.eq.s32.totalorder %s22, 0
      %p54 = por %p52, %p53
      %p55 = scmp.ne.s32.totalorder %s44, %s47
      %p56 = scmp.eq.s32.totalorder %s27, 3
      %p57 = por %p55, %p56
      %p58 = scmp.ne.s32.totalorder %s47, %s48
      %p59 = scmp.eq.s32.totalorder %s27, 0
      %p60 = por %p58, %p59
      %p61 = scmp.ne.s32.totalorder %s47, %s48
      %p62 = scmp.eq.s32.totalorder %s28, 3
      %p63 = por %p61, %p62
      %p65 = scmp.ne.s32.totalorder %s48, %s64
      %p66 = scmp.eq.s32.totalorder %s28, 0
      %p67 = por %p65, %p66
      %s68 = ssub.s32 %s30, %s37
      %s69 = ssub.s32 %s29, %s41
      %s70 = sor.u32 %s68, %s69
      %p71 = scmp.eq.s32.totalorder %s70, 0
      %s73 = sadd.s32 %s72, 1
      %s74 = scalar_select %p71, %s72, %s73
      %p77 = pneg %p71
      %p78 = scmp.eq.s32.totalorder %s22, 3
      %p79 = por %p77, %p78
      %p80 = scmp.ne.s32.totalorder %s72, %s75
      %p81 = scmp.eq.s32.totalorder %s22, 0
      %p82 = por %p80, %p81
      %p83 = scmp.ne.s32.totalorder %s72, %s75
      %p84 = scmp.eq.s32.totalorder %s27, 3
      %p85 = por %p83, %p84
      %p86 = scmp.ne.s32.totalorder %s75, %s76
      %p87 = scmp.eq.s32.totalorder %s27, 0
      %p88 = por %p86, %p87
      %p89 = scmp.ne.s32.totalorder %s75, %s76
      %p90 = scmp.eq.s32.totalorder %s28, 3
      %p91 = por %p89, %p90
      %p93 = scmp.ne.s32.totalorder %s76, %s92
      %p94 = scmp.eq.s32.totalorder %s28, 0
      %p95 = por %p93, %p94
      %s96 = ssub.s32 %s29, %s41
      %p97 = scmp.eq.s32.totalorder %s96, 0
      %s99 = sadd.s32 %s98, 1
      %s100 = scalar_select %p97, %s98, %s99
      %p103 = pneg %p97
      %p104 = scmp.eq.s32.totalorder %s22, 3
      %p105 = por %p103, %p104
      %p106 = scmp.ne.s32.totalorder %s98, %s101
      %p107 = scmp.eq.s32.totalorder %s22, 0
      %p108 = por %p106, %p107
      %p109 = scmp.ne.s32.totalorder %s98, %s101
      %p110 = scmp.eq.s32.totalorder %s27, 3
      %p111 = por %p109, %p110
      %p112 = scmp.ne.s32.totalorder %s101, %s102
      %p113 = scmp.eq.s32.totalorder %s27, 0
      %p114 = por %p112, %p113
      %p115 = scmp.ne.s32.totalorder %s101, %s102
      %p116 = scmp.eq.s32.totalorder %s28, 3
      %p117 = por %p115, %p116
      %p119 = scmp.ne.s32.totalorder %s102, %s118
      %p120 = scmp.eq.s32.totalorder %s28, 0
      %p121 = por %p119, %p120
      %s122 = ssub.s32 %s29, %s41
      %p123 = scmp.eq.s32.totalorder %s122, 0
      %s125 = sadd.s32 %s124, 1
      %s126 = scalar_select %p123, %s124, %s125
      %p129 = pneg %p123
      %p130 = scmp.eq.s32.totalorder %s22, 3
      %p131 = por %p129, %p130
      %p132 = scmp.ne.s32.totalorder %s124, %s127
      %p133 = scmp.eq.s32.totalorder %s22, 0
      %p134 = por %p132, %p133
      %p135 = scmp.ne.s32.totalorder %s124, %s127
      %p136 = scmp.eq.s32.totalorder %s27, 3
      %p137 = por %p135, %p136
      %p138 = scmp.ne.s32.totalorder %s127, %s128
      %p139 = scmp.eq.s32.totalorder %s27, 0
      %p140 = por %p138, %p139
      %p141 = scmp.ne.s32.totalorder %s127, %s128
      %p142 = scmp.eq.s32.totalorder %s28, 3
      %p143 = por %p141, %p142
      %p145 = scmp.ne.s32.totalorder %s128, %s144
      %p146 = scmp.eq.s32.totalorder %s28, 0
      %p147 = por %p145, %p146
      %s148 = ssub.s32 %s29, %s41
      %p149 = scmp.eq.s32.totalorder %s148, 0
      %s151 = sadd.s32 %s150, 1
      %s152 = scalar_select %p149, %s150, %s151
      %p155 = pneg %p149
      %p156 = scmp.eq.s32.totalorder %s22, 3
      %p157 = por %p155, %p156
      %p158 = scmp.ne.s32.totalorder %s150, %s153
      %p159 = scmp.eq.s32.totalorder %s22, 0
      %p160 = por %p158, %p159
      %p161 = scmp.ne.s32.totalorder %s150, %s153
      %p162 = scmp.eq.s32.totalorder %s27, 3
      %p163 = por %p161, %p162
      %p164 = scmp.ne.s32.totalorder %s153, %s154
      %p165 = scmp.eq.s32.totalorder %s27, 0
      %p166 = por %p164, %p165
      %p167 = scmp.ne.s32.totalorder %s153, %s154
      %p168 = scmp.eq.s32.totalorder %s28, 3
      %p169 = por %p167, %p168
      %p171 = scmp.ne.s32.totalorder %s154, %s170
      %p172 = scmp.eq.s32.totalorder %s28, 0
      %p173 = por %p171, %p172
      %p174 = scmp.le.s32.totalorder 1, %s22
      %p175 = scmp.lt.s32.totalorder %s22, 5
      %p176 = pnand %p174, %p175
      %p177 = pneg %p176
      // Predicated region
      $region9: #{tpu_custom_call.1} parent=5 // pred_check
        _
      $region10: #{tpu_custom_call.1} parent=5 // pred_check_branch
        %179 = sbr.rel (%p176) target = $region12
      $region11: #{tpu_custom_call.1} parent=5 // pred_region
        %s180 = ssub.s32 %s22, 1
      $region12: #{tpu_custom_call.1} parent=5 // pred_fallthru
        _
      %p181 = scmp.lt.s32.totalorder %s22, 4
      // Predicated region
      $region13: #{tpu_custom_call.1} parent=5 // pred_check
        %p182 = pneg %p181
      $region14: #{tpu_custom_call.1} parent=5 // pred_check_branch
        %184 = sbr.rel (%p182) target = $region16
      $region15: #{tpu_custom_call.1} parent=5 // pred_region
        // Predicated region
        $region17: #{tpu_custom_call.1} parent=15 // pred_check
          %p185 = pneg %p54
        $region18: #{tpu_custom_call.1} parent=15 // pred_check_branch
          %187 = sbr.rel (%p185) target = $region20
        $region19: #{tpu_custom_call.1} parent=15 // pred_region
          %s188 = sand.u32 %s44, 1
          %s189 = scalar_lea.sflag [#allocation4], %s188
          %s190 = sand.u32 %s44, 1
          %s191 = smul.addr %s190, 16
          %s192 = scalar_lea.vmem [#allocation3], %s191
          %s193 = smul.u32 4, %s30
          %s195 = ssub.s32 256, 256
          %196 = vsyncadd %s189, %s195
          %s197 = smul.addr %s193, 64
          %s198 = scalar_lea.hbm %s0, %s197
          %s200 = sshll.u32 %s192, 4
          %s201 = int_to_ptr.vmem [resolvable:$true] %s200
          %203 = dma.hbm_to_vmem [thread:$0]  %s198, 256, %s201, %s189
        $region20: #{tpu_custom_call.1} parent=15 // pred_fallthru
          _
        // Predicated region
        $region21: #{tpu_custom_call.1} parent=15 // pred_check
          %p204 = pneg %p82
        $region22: #{tpu_custom_call.1} parent=15 // pred_check_branch
          %206 = sbr.rel (%p204) target = $region24
        $region23: #{tpu_custom_call.1} parent=15 // pred_region
          %s207 = sand.u32 %s22, 1
          %s208 = scalar_lea.sflag [#allocation7], %s207
          %s209 = sand.u32 %s72, 1
          %s210 = smul.addr %s209, 1024
          %s211 = scalar_lea.vmem [#allocation6], %s210
          %s212 = smul.u32 64, %s30
          %s213 = smul.u32 4, %s29
          %s215 = ssub.s32 16384, 16384
          %216 = vsyncadd %s208, %s215
          %s217 = smul.addr %s212, 8
          %s218 = sadd.s32 %s213, %s217
          %s219 = smul.addr %s218, 64
          %s220 = scalar_lea.hbm %s1, %s219
          %s221 = sshll.u32 %s211, 4
          %s222 = int_to_ptr.vmem [resolvable:$true] %s221
          %227 = dma.hbm_to_vmem [thread:$0]  %s220, 16384, %s222, %s208, 512, 256, 16
        $region24: #{tpu_custom_call.1} parent=15 // pred_fallthru
          _
        // Predicated region
        $region25: #{tpu_custom_call.1} parent=15 // pred_check
          %p228 = pneg %p108
        $region26: #{tpu_custom_call.1} parent=15 // pred_check_branch
          %230 = sbr.rel (%p228) target = $region28
        $region27: #{tpu_custom_call.1} parent=15 // pred_region
          %s231 = sand.u32 %s22, 1
          %s232 = scalar_lea.sflag [#allocation7], %s231
          %s233 = sand.u32 %s98, 1
          %s234 = smul.addr %s233, 32
          %s235 = scalar_lea.vmem [#allocation8], %s234
          %s236 = smul.u32 4, %s29
          %s238 = ssub.s32 512, 512
          %239 = vsyncadd %s232, %s238
          %s240 = smul.addr %s236, 128
          %s241 = scalar_lea.hbm %s2, %s240
          %s243 = sshll.u32 %s235, 4
          %s244 = int_to_ptr.vmem [resolvable:$true] %s243
          %246 = dma.hbm_to_vmem [thread:$0]  %s241, 512, %s244, %s232
        $region28: #{tpu_custom_call.1} parent=15 // pred_fallthru
          _
        // Predicated region
        $region29: #{tpu_custom_call.1} parent=15 // pred_check
          %p247 = pneg %p134
        $region30: #{tpu_custom_call.1} parent=15 // pred_check_branch
          %249 = sbr.rel (%p247) target = $region32
        $region31: #{tpu_custom_call.1} parent=15 // pred_region
          %s250 = sand.u32 %s124, 1
          %s251 = scalar_lea.sflag [#allocation10], %s250
          %s252 = sand.u32 %s124, 1
          %s253 = smul.addr %s252, 4
          %s254 = scalar_lea.vmem [#allocation9], %s253
          %s255 = smul.u32 4, %s29
          %s257 = ssub.s32 64, 64
          %258 = vsyncadd %s251, %s257
          %s259 = smul.addr %s255, 16
          %s260 = scalar_lea.hbm %s3, %s259
          %s262 = sshll.u32 %s254, 4
          %s263 = int_to_ptr.vmem [resolvable:$true] %s262
          %265 = dma.hbm_to_vmem [thread:$0]  %s260, 64, %s263, %s251
        $region32: #{tpu_custom_call.1} parent=15 // pred_fallthru
          _
      $region16: #{tpu_custom_call.1} parent=5 // pred_fallthru
        _
      %p266 = scmp.le.s32.totalorder 1, %s22
      %p267 = scmp.lt.s32.totalorder %s22, 5
      %p268 = pnand %p266, %p267
      %p269 = pneg %p268
      // Predicated region
      $region33: #{tpu_custom_call.1} parent=5 // pred_check
        _
      $region34: #{tpu_custom_call.1} parent=5 // pred_check_branch
        %271 = sbr.rel (%p268) target = $region36
      $region35: #{tpu_custom_call.1} parent=5 // pred_region
        %s272 = ssub.s32 %s22, 1
        %s273 = sand.u32 %s47, 1
        %s274 = scalar_lea.sflag [#allocation4], %s273
        %s275 = sand.u32 %s47, 1
        %s276 = smul.addr %s275, 16
        %s277 = scalar_lea.vmem [#allocation3], %s276
        // Predicated region
        $region37: #{tpu_custom_call.1} parent=35 // pred_check
          %p278 = pneg %p60
        $region38: #{tpu_custom_call.1} parent=35 // pred_check_branch
          %280 = sbr.rel (%p278) target = $region40
        $region39: #{tpu_custom_call.1} parent=35 // pred_region
          %281 = dma.done %s274, 256
        $region40: #{tpu_custom_call.1} parent=35 // pred_fallthru
          _
        %s282 = sand.u32 %s27, 1
        %s283 = scalar_lea.sflag [#allocation7], %s282
        %s284 = sand.u32 %s75, 1
        %s285 = smul.addr %s284, 1024
        %s286 = scalar_lea.vmem [#allocation6], %s285
        // Predicated region
        $region41: #{tpu_custom_call.1} parent=35 // pred_check
          %p287 = pneg %p88
        $region42: #{tpu_custom_call.1} parent=35 // pred_check_branch
          %289 = sbr.rel (%p287) target = $region44
        $region43: #{tpu_custom_call.1} parent=35 // pred_region
          %290 = dma.done %s283, 16384
        $region44: #{tpu_custom_call.1} parent=35 // pred_fallthru
          _
        %s291 = sand.u32 %s27, 1
        %s292 = scalar_lea.sflag [#allocation7], %s291
        %s293 = sand.u32 %s101, 1
        %s294 = smul.addr %s293, 32
        %s295 = scalar_lea.vmem [#allocation8], %s294
        // Predicated region
        $region45: #{tpu_custom_call.1} parent=35 // pred_check
          %p296 = pneg %p114
        $region46: #{tpu_custom_call.1} parent=35 // pred_check_branch
          %298 = sbr.rel (%p296) target = $region48
        $region47: #{tpu_custom_call.1} parent=35 // pred_region
          %299 = dma.done %s292, 512
        $region48: #{tpu_custom_call.1} parent=35 // pred_fallthru
          _
        %s300 = sand.u32 %s127, 1
        %s301 = scalar_lea.sflag [#allocation10], %s300
        %s302 = sand.u32 %s127, 1
        %s303 = smul.addr %s302, 4
        %s304 = scalar_lea.vmem [#allocation9], %s303
        // Predicated region
        $region49: #{tpu_custom_call.1} parent=35 // pred_check
          %p305 = pneg %p140
        $region50: #{tpu_custom_call.1} parent=35 // pred_check_branch
          %307 = sbr.rel (%p305) target = $region52
        $region51: #{tpu_custom_call.1} parent=35 // pred_region
          %308 = dma.done %s301, 64
        $region52: #{tpu_custom_call.1} parent=35 // pred_fallthru
          _
        %s309 = sand.u32 %s47, 1
        %s310 = scalar_lea.sflag [#allocation4], %s309
        %s311 = sand.u32 %s47, 1
        %s312 = smul.addr %s311, 16
        %s313 = scalar_lea.vmem [#allocation3], %s312
        %p314 = pneg %p60
        %p315 = pneg %p57
        %s316 = sand.u32 %s27, 1
        %s317 = scalar_lea.sflag [#allocation7], %s316
        %s318 = sand.u32 %s75, 1
        %s319 = smul.addr %s318, 1024
        %s320 = scalar_lea.vmem [#allocation6], %s319
        %p321 = pneg %p88
        %p322 = pneg %p85
        %s323 = sand.u32 %s27, 1
        %s324 = scalar_lea.sflag [#allocation7], %s323
        %s325 = sand.u32 %s101, 1
        %s326 = smul.addr %s325, 32
        %s327 = scalar_lea.vmem [#allocation8], %s326
        %p328 = pneg %p114
        %p329 = pneg %p111
        %s330 = sand.u32 %s127, 1
        %s331 = scalar_lea.sflag [#allocation10], %s330
        %s332 = sand.u32 %s127, 1
        %s333 = smul.addr %s332, 4
        %s334 = scalar_lea.vmem [#allocation9], %s333
        %p335 = pneg %p140
        %p336 = pneg %p137
        %p337 = pneg %p166
        %p338 = pneg %p163
        %s339 = sand.u32 %s153, 1
        %s340 = scalar_lea.sflag [#allocation5], %s339
        %s341 = sand.u32 %s153, 1
        %s342 = smul.addr %s341, 32
        %s343 = scalar_lea.vmem [#allocation11], %s342
        %s344 = smul.u32 4, %s32
        %s345 = smul.u32 64, %s32
        %s346 = smul.u32 4, %s31
        %s347 = smul.u32 4, %s31
        %s348 = smul.u32 4, %s31
        %s349 = smul.u32 4, %s31
        %p350 = scmp.eq.s32.totalorder %s32, 0
        // Predicated region
        $region53: #{tpu_custom_call.1} parent=35 // pred_check
          %p351 = pneg %p350
        $region54: #{tpu_custom_call.1} parent=35 // pred_check_branch
          %353 = sbr.rel (%p351) target = $region56
        $region55: #{tpu_custom_call.1} parent=35 // pred_region
          %354 = vst [vmem:[#allocation2] sm:$0xff] 0.0
          %355 = vst [vmem:[#allocation2 + $0x8] sm:$0xff] 0.0
          %356 = vst [vmem:[#allocation2 + $0x10] sm:$0xff] 0.0
          %357 = vst [vmem:[#allocation2 + $0x18] sm:$0xff] 0.0
        $region56: #{tpu_custom_call.1} parent=35 // pred_fallthru
          _
        %v358 = vld [vmem:[#allocation2] sm:$0xff]
        %v359 = vld [vmem:[#allocation2 + $0x8] sm:$0xff]
        %v360 = vld [vmem:[#allocation2 + $0x10] sm:$0xff]
        %v361 = vld [vmem:[#allocation2 + $0x18] sm:$0xff]
        %v362 = vld [vmem:[%s277] sm:$0xff]
        %v363 = vld [vmem:[%s277 + $0x8] sm:$0xff]
        %v364 = vld [vmem:[%s286] sm:$0xff]
        %v365 = vld [vmem:[%s286 + $0x8] sm:$0xff]
        %v366 = vld [vmem:[%s286 + $0x10] sm:$0xff]
        %v367 = vld [vmem:[%s286 + $0x18] sm:$0xff]
        %v368 = vld [vmem:[%s286 + $0x20] sm:$0xff]
        %v369 = vld [vmem:[%s286 + $0x28] sm:$0xff]
        %v370 = vld [vmem:[%s286 + $0x30] sm:$0xff]
        %v371 = vld [vmem:[%s286 + $0x38] sm:$0xff]
        %v372 = vld [vmem:[%s286 + $0x40] sm:$0xff]
        %v373 = vld [vmem:[%s286 + $0x48] sm:$0xff]
        %v374 = vld [vmem:[%s286 + $0x50] sm:$0xff]
        %v375 = vld [vmem:[%s286 + $0x58] sm:$0xff]
        %v376 = vld [vmem:[%s286 + $0x60] sm:$0xff]
        %v377 = vld [vmem:[%s286 + $0x68] sm:$0xff]
        %v378 = vld [vmem:[%s286 + $0x70] sm:$0xff]
        %v379 = vld [vmem:[%s286 + $0x78] sm:$0xff]
        %v380 = vld [vmem:[%s286 + $0x80] sm:$0xff]
        %v381 = vld [vmem:[%s286 + $0x88] sm:$0xff]
        %v382 = vld [vmem:[%s286 + $0x90] sm:$0xff]
        %v383 = vld [vmem:[%s286 + $0x98] sm:$0xff]
        %v384 = vld [vmem:[%s286 + $0xa0] sm:$0xff]
        %v385 = vld [vmem:[%s286 + $0xa8] sm:$0xff]
        %v386 = vld [vmem:[%s286 + $0xb0] sm:$0xff]
        %v387 = vld [vmem:[%s286 + $0xb8] sm:$0xff]
        %v388 = vld [vmem:[%s286 + $0xc0] sm:$0xff]
        %v389 = vld [vmem:[%s286 + $0xc8] sm:$0xff]
        %v390 = vld [vmem:[%s286 + $0xd0] sm:$0xff]
        %v391 = vld [vmem:[%s286 + $0xd8] sm:$0xff]
        %v392 = vld [vmem:[%s286 + $0xe0] sm:$0xff]
        %v393 = vld [vmem:[%s286 + $0xe8] sm:$0xff]
        %v394 = vld [vmem:[%s286 + $0xf0] sm:$0xff]
        %v395 = vld [vmem:[%s286 + $0xf8] sm:$0xff]
        %v396 = vld [vmem:[%s286 + $0x100] sm:$0xff]
        %v397 = vld [vmem:[%s286 + $0x108] sm:$0xff]
        %v398 = vld [vmem:[%s286 + $0x110] sm:$0xff]
        %v399 = vld [vmem:[%s286 + $0x118] sm:$0xff]
        %v400 = vld [vmem:[%s286 + $0x120] sm:$0xff]
        %v401 = vld [vmem:[%s286 + $0x128] sm:$0xff]
        %v402 = vld [vmem:[%s286 + $0x130] sm:$0xff]
        %v403 = vld [vmem:[%s286 + $0x138] sm:$0xff]
        %v404 = vld [vmem:[%s286 + $0x140] sm:$0xff]
        %v405 = vld [vmem:[%s286 + $0x148] sm:$0xff]
        %v406 = vld [vmem:[%s286 + $0x150] sm:$0xff]
        %v407 = vld [vmem:[%s286 + $0x158] sm:$0xff]
        %v408 = vld [vmem:[%s286 + $0x160] sm:$0xff]
        %v409 = vld [vmem:[%s286 + $0x168] sm:$0xff]
        %v410 = vld [vmem:[%s286 + $0x170] sm:$0xff]
        %v411 = vld [vmem:[%s286 + $0x178] sm:$0xff]
        %v412 = vld [vmem:[%s286 + $0x180] sm:$0xff]
        %v413 = vld [vmem:[%s286 + $0x188] sm:$0xff]
        %v414 = vld [vmem:[%s286 + $0x190] sm:$0xff]
        %v415 = vld [vmem:[%s286 + $0x198] sm:$0xff]
        %v416 = vld [vmem:[%s286 + $0x1a0] sm:$0xff]
        %v417 = vld [vmem:[%s286 + $0x1a8] sm:$0xff]
        %v418 = vld [vmem:[%s286 + $0x1b0] sm:$0xff]
        %v419 = vld [vmem:[%s286 + $0x1b8] sm:$0xff]
        %v420 = vld [vmem:[%s286 + $0x1c0] sm:$0xff]
        %v421 = vld [vmem:[%s286 + $0x1c8] sm:$0xff]
        %v422 = vld [vmem:[%s286 + $0x1d0] sm:$0xff]
        %v423 = vld [vmem:[%s286 + $0x1d8] sm:$0xff]
        %v424 = vld [vmem:[%s286 + $0x1e0] sm:$0xff]
        %v425 = vld [vmem:[%s286 + $0x1e8] sm:$0xff]
        %v426 = vld [vmem:[%s286 + $0x1f0] sm:$0xff]
        %v427 = vld [vmem:[%s286 + $0x1f8] sm:$0xff]
        %v428 = vld [vmem:[%s286 + $0x200] sm:$0xff]
        %v429 = vld [vmem:[%s286 + $0x208] sm:$0xff]
        %v430 = vld [vmem:[%s286 + $0x210] sm:$0xff]
        %v431 = vld [vmem:[%s286 + $0x218] sm:$0xff]
        %v432 = vld [vmem:[%s286 + $0x220] sm:$0xff]
        %v433 = vld [vmem:[%s286 + $0x228] sm:$0xff]
        %v434 = vld [vmem:[%s286 + $0x230] sm:$0xff]
        %v435 = vld [vmem:[%s286 + $0x238] sm:$0xff]
        %v436 = vld [vmem:[%s286 + $0x240] sm:$0xff]
        %v437 = vld [vmem:[%s286 + $0x248] sm:$0xff]
        %v438 = vld [vmem:[%s286 + $0x250] sm:$0xff]
        %v439 = vld [vmem:[%s286 + $0x258] sm:$0xff]
        %v440 = vld [vmem:[%s286 + $0x260] sm:$0xff]
        %v441 = vld [vmem:[%s286 + $0x268] sm:$0xff]
        %v442 = vld [vmem:[%s286 + $0x270] sm:$0xff]
        %v443 = vld [vmem:[%s286 + $0x278] sm:$0xff]
        %v444 = vld [vmem:[%s286 + $0x280] sm:$0xff]
        %v445 = vld [vmem:[%s286 + $0x288] sm:$0xff]
        %v446 = vld [vmem:[%s286 + $0x290] sm:$0xff]
        %v447 = vld [vmem:[%s286 + $0x298] sm:$0xff]
        %v448 = vld [vmem:[%s286 + $0x2a0] sm:$0xff]
        %v449 = vld [vmem:[%s286 + $0x2a8] sm:$0xff]
        %v450 = vld [vmem:[%s286 + $0x2b0] sm:$0xff]
        %v451 = vld [vmem:[%s286 + $0x2b8] sm:$0xff]
        %v452 = vld [vmem:[%s286 + $0x2c0] sm:$0xff]
        %v453 = vld [vmem:[%s286 + $0x2c8] sm:$0xff]
        %v454 = vld [vmem:[%s286 + $0x2d0] sm:$0xff]
        %v455 = vld [vmem:[%s286 + $0x2d8] sm:$0xff]
        %v456 = vld [vmem:[%s286 + $0x2e0] sm:$0xff]
        %v457 = vld [vmem:[%s286 + $0x2e8] sm:$0xff]
        %v458 = vld [vmem:[%s286 + $0x2f0] sm:$0xff]
        %v459 = vld [vmem:[%s286 + $0x2f8] sm:$0xff]
        %v460 = vld [vmem:[%s286 + $0x300] sm:$0xff]
        %v461 = vld [vmem:[%s286 + $0x308] sm:$0xff]
        %v462 = vld [vmem:[%s286 + $0x310] sm:$0xff]
        %v463 = vld [vmem:[%s286 + $0x318] sm:$0xff]
        %v464 = vld [vmem:[%s286 + $0x320] sm:$0xff]
        %v465 = vld [vmem:[%s286 + $0x328] sm:$0xff]
        %v466 = vld [vmem:[%s286 + $0x330] sm:$0xff]
        %v467 = vld [vmem:[%s286 + $0x338] sm:$0xff]
        %v468 = vld [vmem:[%s286 + $0x340] sm:$0xff]
        %v469 = vld [vmem:[%s286 + $0x348] sm:$0xff]
        %v470 = vld [vmem:[%s286 + $0x350] sm:$0xff]
        %v471 = vld [vmem:[%s286 + $0x358] sm:$0xff]
        %v472 = vld [vmem:[%s286 + $0x360] sm:$0xff]
        %v473 = vld [vmem:[%s286 + $0x368] sm:$0xff]
        %v474 = vld [vmem:[%s286 + $0x370] sm:$0xff]
        %v475 = vld [vmem:[%s286 + $0x378] sm:$0xff]
        %v476 = vld [vmem:[%s286 + $0x380] sm:$0xff]
        %v477 = vld [vmem:[%s286 + $0x388] sm:$0xff]
        %v478 = vld [vmem:[%s286 + $0x390] sm:$0xff]
        %v479 = vld [vmem:[%s286 + $0x398] sm:$0xff]
        %v480 = vld [vmem:[%s286 + $0x3a0] sm:$0xff]
        %v481 = vld [vmem:[%s286 + $0x3a8] sm:$0xff]
        %v482 = vld [vmem:[%s286 + $0x3b0] sm:$0xff]
        %v483 = vld [vmem:[%s286 + $0x3b8] sm:$0xff]
        %v484 = vld [vmem:[%s286 + $0x3c0] sm:$0xff]
        %v485 = vld [vmem:[%s286 + $0x3c8] sm:$0xff]
        %v486 = vld [vmem:[%s286 + $0x3d0] sm:$0xff]
        %v487 = vld [vmem:[%s286 + $0x3d8] sm:$0xff]
        %v488 = vld [vmem:[%s286 + $0x3e0] sm:$0xff]
        %v489 = vld [vmem:[%s286 + $0x3e8] sm:$0xff]
        %v490 = vld [vmem:[%s286 + $0x3f0] sm:$0xff]
        %v491 = vld [vmem:[%s286 + $0x3f8] sm:$0xff]
        %v494 = vunpack.c.l.b16 %v362
        %v495 = vunpack.c.h.b16 %v362
        %v496 = vunpack.c.l.b16 %v363
        %v497 = vunpack.c.h.b16 %v363
        %v498 = vpack.c.b16 %v494, %v494
        %v499 = vpack.c.b16 %v495, %v495
        %v500 = vpack.c.b16 %v496, %v496
        %v501 = vpack.c.b16 %v497, %v497
        %v634 = vunpack.c.l.b16 %v364
        %v635 = vunpack.c.h.b16 %v364
        %v636 = vunpack.c.l.b16 %v365
        %v637 = vunpack.c.h.b16 %v365
        %v638 = vunpack.c.l.b16 %v366
        %v639 = vunpack.c.h.b16 %v366
        %v640 = vunpack.c.l.b16 %v367
        %v641 = vunpack.c.h.b16 %v367
        %v642 = vunpack.c.l.b16 %v368
        %v643 = vunpack.c.h.b16 %v368
        %v644 = vunpack.c.l.b16 %v369
        %v645 = vunpack.c.h.b16 %v369
        %v646 = vunpack.c.l.b16 %v370
        %v647 = vunpack.c.h.b16 %v370
        %v648 = vunpack.c.l.b16 %v371
        %v649 = vunpack.c.h.b16 %v371
        %v650 = vunpack.c.l.b16 %v372
        %v651 = vunpack.c.h.b16 %v372
        %v652 = vunpack.c.l.b16 %v373
        %v653 = vunpack.c.h.b16 %v373
        %v654 = vunpack.c.l.b16 %v374
        %v655 = vunpack.c.h.b16 %v374
        %v656 = vunpack.c.l.b16 %v375
        %v657 = vunpack.c.h.b16 %v375
        %v658 = vunpack.c.l.b16 %v376
        %v659 = vunpack.c.h.b16 %v376
        %v660 = vunpack.c.l.b16 %v377
        %v661 = vunpack.c.h.b16 %v377
        %v662 = vunpack.c.l.b16 %v378
        %v663 = vunpack.c.h.b16 %v378
        %v664 = vunpack.c.l.b16 %v379
        %v665 = vunpack.c.h.b16 %v379
        %v666 = vunpack.c.l.b16 %v380
        %v667 = vunpack.c.h.b16 %v380
        %v668 = vunpack.c.l.b16 %v381
        %v669 = vunpack.c.h.b16 %v381
        %v670 = vunpack.c.l.b16 %v382
        %v671 = vunpack.c.h.b16 %v382
        %v672 = vunpack.c.l.b16 %v383
        %v673 = vunpack.c.h.b16 %v383
        %v674 = vunpack.c.l.b16 %v384
        %v675 = vunpack.c.h.b16 %v384
        %v676 = vunpack.c.l.b16 %v385
        %v677 = vunpack.c.h.b16 %v385
        %v678 = vunpack.c.l.b16 %v386
        %v679 = vunpack.c.h.b16 %v386
        %v680 = vunpack.c.l.b16 %v387
        %v681 = vunpack.c.h.b16 %v387
        %v682 = vunpack.c.l.b16 %v388
        %v683 = vunpack.c.h.b16 %v388
        %v684 = vunpack.c.l.b16 %v389
        %v685 = vunpack.c.h.b16 %v389
        %v686 = vunpack.c.l.b16 %v390
        %v687 = vunpack.c.h.b16 %v390
        %v688 = vunpack.c.l.b16 %v391
        %v689 = vunpack.c.h.b16 %v391
        %v690 = vunpack.c.l.b16 %v392
        %v691 = vunpack.c.h.b16 %v392
        %v692 = vunpack.c.l.b16 %v393
        %v693 = vunpack.c.h.b16 %v393
        %v694 = vunpack.c.l.b16 %v394
        %v695 = vunpack.c.h.b16 %v394
        %v696 = vunpack.c.l.b16 %v395
        %v697 = vunpack.c.h.b16 %v395
        %v698 = vunpack.c.l.b16 %v396
        %v699 = vunpack.c.h.b16 %v396
        %v700 = vunpack.c.l.b16 %v397
        %v701 = vunpack.c.h.b16 %v397
        %v702 = vunpack.c.l.b16 %v398
        %v703 = vunpack.c.h.b16 %v398
        %v704 = vunpack.c.l.b16 %v399
        %v705 = vunpack.c.h.b16 %v399
        %v706 = vunpack.c.l.b16 %v400
        %v707 = vunpack.c.h.b16 %v400
        %v708 = vunpack.c.l.b16 %v401
        %v709 = vunpack.c.h.b16 %v401
        %v710 = vunpack.c.l.b16 %v402
        %v711 = vunpack.c.h.b16 %v402
        %v712 = vunpack.c.l.b16 %v403
        %v713 = vunpack.c.h.b16 %v403
        %v714 = vunpack.c.l.b16 %v404
        %v715 = vunpack.c.h.b16 %v404
        %v716 = vunpack.c.l.b16 %v405
        %v717 = vunpack.c.h.b16 %v405
        %v718 = vunpack.c.l.b16 %v406
        %v719 = vunpack.c.h.b16 %v406
        %v720 = vunpack.c.l.b16 %v407
        %v721 = vunpack.c.h.b16 %v407
        %v722 = vunpack.c.l.b16 %v408
        %v723 = vunpack.c.h.b16 %v408
        %v724 = vunpack.c.l.b16 %v409
        %v725 = vunpack.c.h.b16 %v409
        %v726 = vunpack.c.l.b16 %v410
        %v727 = vunpack.c.h.b16 %v410
        %v728 = vunpack.c.l.b16 %v411
        %v729 = vunpack.c.h.b16 %v411
        %v730 = vunpack.c.l.b16 %v412
        %v731 = vunpack.c.h.b16 %v412
        %v732 = vunpack.c.l.b16 %v413
        %v733 = vunpack.c.h.b16 %v413
        %v734 = vunpack.c.l.b16 %v414
        %v735 = vunpack.c.h.b16 %v414
        %v736 = vunpack.c.l.b16 %v415
        %v737 = vunpack.c.h.b16 %v415
        %v738 = vunpack.c.l.b16 %v416
        %v739 = vunpack.c.h.b16 %v416
        %v740 = vunpack.c.l.b16 %v417
        %v741 = vunpack.c.h.b16 %v417
        %v742 = vunpack.c.l.b16 %v418
        %v743 = vunpack.c.h.b16 %v418
        %v744 = vunpack.c.l.b16 %v419
        %v745 = vunpack.c.h.b16 %v419
        %v746 = vunpack.c.l.b16 %v420
        %v747 = vunpack.c.h.b16 %v420
        %v748 = vunpack.c.l.b16 %v421
        %v749 = vunpack.c.h.b16 %v421
        %v750 = vunpack.c.l.b16 %v422
        %v751 = vunpack.c.h.b16 %v422
        %v752 = vunpack.c.l.b16 %v423
        %v753 = vunpack.c.h.b16 %v423
        %v754 = vunpack.c.l.b16 %v424
        %v755 = vunpack.c.h.b16 %v424
        %v756 = vunpack.c.l.b16 %v425
        %v757 = vunpack.c.h.b16 %v425
        %v758 = vunpack.c.l.b16 %v426
        %v759 = vunpack.c.h.b16 %v426
        %v760 = vunpack.c.l.b16 %v427
        %v761 = vunpack.c.h.b16 %v427
        %v762 = vunpack.c.l.b16 %v428
        %v763 = vunpack.c.h.b16 %v428
        %v764 = vunpack.c.l.b16 %v429
        %v765 = vunpack.c.h.b16 %v429
        %v766 = vunpack.c.l.b16 %v430
        %v767 = vunpack.c.h.b16 %v430
        %v768 = vunpack.c.l.b16 %v431
        %v769 = vunpack.c.h.b16 %v431
        %v770 = vunpack.c.l.b16 %v432
        %v771 = vunpack.c.h.b16 %v432
        %v772 = vunpack.c.l.b16 %v433
        %v773 = vunpack.c.h.b16 %v433
        %v774 = vunpack.c.l.b16 %v434
        %v775 = vunpack.c.h.b16 %v434
        %v776 = vunpack.c.l.b16 %v435
        %v777 = vunpack.c.h.b16 %v435
        %v778 = vunpack.c.l.b16 %v436
        %v779 = vunpack.c.h.b16 %v436
        %v780 = vunpack.c.l.b16 %v437
        %v781 = vunpack.c.h.b16 %v437
        %v782 = vunpack.c.l.b16 %v438
        %v783 = vunpack.c.h.b16 %v438
        %v784 = vunpack.c.l.b16 %v439
        %v785 = vunpack.c.h.b16 %v439
        %v786 = vunpack.c.l.b16 %v440
        %v787 = vunpack.c.h.b16 %v440
        %v788 = vunpack.c.l.b16 %v441
        %v789 = vunpack.c.h.b16 %v441
        %v790 = vunpack.c.l.b16 %v442
        %v791 = vunpack.c.h.b16 %v442
        %v792 = vunpack.c.l.b16 %v443
        %v793 = vunpack.c.h.b16 %v443
        %v794 = vunpack.c.l.b16 %v444
        %v795 = vunpack.c.h.b16 %v444
        %v796 = vunpack.c.l.b16 %v445
        %v797 = vunpack.c.h.b16 %v445
        %v798 = vunpack.c.l.b16 %v446
        %v799 = vunpack.c.h.b16 %v446
        %v800 = vunpack.c.l.b16 %v447
        %v801 = vunpack.c.h.b16 %v447
        %v802 = vunpack.c.l.b16 %v448
        %v803 = vunpack.c.h.b16 %v448
        %v804 = vunpack.c.l.b16 %v449
        %v805 = vunpack.c.h.b16 %v449
        %v806 = vunpack.c.l.b16 %v450
        %v807 = vunpack.c.h.b16 %v450
        %v808 = vunpack.c.l.b16 %v451
        %v809 = vunpack.c.h.b16 %v451
        %v810 = vunpack.c.l.b16 %v452
        %v811 = vunpack.c.h.b16 %v452
        %v812 = vunpack.c.l.b16 %v453
        %v813 = vunpack.c.h.b16 %v453
        %v814 = vunpack.c.l.b16 %v454
        %v815 = vunpack.c.h.b16 %v454
        %v816 = vunpack.c.l.b16 %v455
        %v817 = vunpack.c.h.b16 %v455
        %v818 = vunpack.c.l.b16 %v456
        %v819 = vunpack.c.h.b16 %v456
        %v820 = vunpack.c.l.b16 %v457
        %v821 = vunpack.c.h.b16 %v457
        %v822 = vunpack.c.l.b16 %v458
        %v823 = vunpack.c.h.b16 %v458
        %v824 = vunpack.c.l.b16 %v459
        %v825 = vunpack.c.h.b16 %v459
        %v826 = vunpack.c.l.b16 %v460
        %v827 = vunpack.c.h.b16 %v460
        %v828 = vunpack.c.l.b16 %v461
        %v829 = vunpack.c.h.b16 %v461
        %v830 = vunpack.c.l.b16 %v462
        %v831 = vunpack.c.h.b16 %v462
        %v832 = vunpack.c.l.b16 %v463
        %v833 = vunpack.c.h.b16 %v463
        %v834 = vunpack.c.l.b16 %v464
        %v835 = vunpack.c.h.b16 %v464
        %v836 = vunpack.c.l.b16 %v465
        %v837 = vunpack.c.h.b16 %v465
        %v838 = vunpack.c.l.b16 %v466
        %v839 = vunpack.c.h.b16 %v466
        %v840 = vunpack.c.l.b16 %v467
        %v841 = vunpack.c.h.b16 %v467
        %v842 = vunpack.c.l.b16 %v468
        %v843 = vunpack.c.h.b16 %v468
        %v844 = vunpack.c.l.b16 %v469
        %v845 = vunpack.c.h.b16 %v469
        %v846 = vunpack.c.l.b16 %v470
        %v847 = vunpack.c.h.b16 %v470
        %v848 = vunpack.c.l.b16 %v471
        %v849 = vunpack.c.h.b16 %v471
        %v850 = vunpack.c.l.b16 %v472
        %v851 = vunpack.c.h.b16 %v472
        %v852 = vunpack.c.l.b16 %v473
        %v853 = vunpack.c.h.b16 %v473
        %v854 = vunpack.c.l.b16 %v474
        %v855 = vunpack.c.h.b16 %v474
        %v856 = vunpack.c.l.b16 %v475
        %v857 = vunpack.c.h.b16 %v475
        %v858 = vunpack.c.l.b16 %v476
        %v859 = vunpack.c.h.b16 %v476
        %v860 = vunpack.c.l.b16 %v477
        %v861 = vunpack.c.h.b16 %v477
        %v862 = vunpack.c.l.b16 %v478
        %v863 = vunpack.c.h.b16 %v478
        %v864 = vunpack.c.l.b16 %v479
        %v865 = vunpack.c.h.b16 %v479
        %v866 = vunpack.c.l.b16 %v480
        %v867 = vunpack.c.h.b16 %v480
        %v868 = vunpack.c.l.b16 %v481
        %v869 = vunpack.c.h.b16 %v481
        %v870 = vunpack.c.l.b16 %v482
        %v871 = vunpack.c.h.b16 %v482
        %v872 = vunpack.c.l.b16 %v483
        %v873 = vunpack.c.h.b16 %v483
        %v874 = vunpack.c.l.b16 %v484
        %v875 = vunpack.c.h.b16 %v484
        %v876 = vunpack.c.l.b16 %v485
        %v877 = vunpack.c.h.b16 %v485
        %v878 = vunpack.c.l.b16 %v486
        %v879 = vunpack.c.h.b16 %v486
        %v880 = vunpack.c.l.b16 %v487
        %v881 = vunpack.c.h.b16 %v487
        %v882 = vunpack.c.l.b16 %v488
        %v883 = vunpack.c.h.b16 %v488
        %v884 = vunpack.c.l.b16 %v489
        %v885 = vunpack.c.h.b16 %v489
        %v886 = vunpack.c.l.b16 %v490
        %v887 = vunpack.c.h.b16 %v490
        %v888 = vunpack.c.l.b16 %v491
        %v889 = vunpack.c.h.b16 %v491
        %v890 = vpack.c.b16 %v638, %v634
        %v891 = vpack.c.b16 %v639, %v635
        %v892 = vpack.c.b16 %v640, %v636
        %v893 = vpack.c.b16 %v641, %v637
        %v894 = vpack.c.b16 %v646, %v642
        %v895 = vpack.c.b16 %v647, %v643
        %v896 = vpack.c.b16 %v648, %v644
        %v897 = vpack.c.b16 %v649, %v645
        %v898 = vpack.c.b16 %v654, %v650
        %v899 = vpack.c.b16 %v655, %v651
        %v900 = vpack.c.b16 %v656, %v652
        %v901 = vpack.c.b16 %v657, %v653
        %v902 = vpack.c.b16 %v662, %v658
        %v903 = vpack.c.b16 %v663, %v659
        %v904 = vpack.c.b16 %v664, %v660
        %v905 = vpack.c.b16 %v665, %v661
        %v906 = vpack.c.b16 %v670, %v666
        %v907 = vpack.c.b16 %v671, %v667
        %v908 = vpack.c.b16 %v672, %v668
        %v909 = vpack.c.b16 %v673, %v669
        %v910 = vpack.c.b16 %v678, %v674
        %v911 = vpack.c.b16 %v679, %v675
        %v912 = vpack.c.b16 %v680, %v676
        %v913 = vpack.c.b16 %v681, %v677
        %v914 = vpack.c.b16 %v686, %v682
        %v915 = vpack.c.b16 %v687, %v683
        %v916 = vpack.c.b16 %v688, %v684
        %v917 = vpack.c.b16 %v689, %v685
        %v918 = vpack.c.b16 %v694, %v690
        %v919 = vpack.c.b16 %v695, %v691
        %v920 = vpack.c.b16 %v696, %v692
        %v921 = vpack.c.b16 %v697, %v693
        %v922 = vpack.c.b16 %v702, %v698
        %v923 = vpack.c.b16 %v703, %v699
        %v924 = vpack.c.b16 %v704, %v700
        %v925 = vpack.c.b16 %v705, %v701
        %v926 = vpack.c.b16 %v710, %v706
        %v927 = vpack.c.b16 %v711, %v707
        %v928 = vpack.c.b16 %v712, %v708
        %v929 = vpack.c.b16 %v713, %v709
        %v930 = vpack.c.b16 %v718, %v714
        %v931 = vpack.c.b16 %v719, %v715
        %v932 = vpack.c.b16 %v720, %v716
        %v933 = vpack.c.b16 %v721, %v717
        %v934 = vpack.c.b16 %v726, %v722
        %v935 = vpack.c.b16 %v727, %v723
        %v936 = vpack.c.b16 %v728, %v724
        %v937 = vpack.c.b16 %v729, %v725
        %v938 = vpack.c.b16 %v734, %v730
        %v939 = vpack.c.b16 %v735, %v731
        %v940 = vpack.c.b16 %v736, %v732
        %v941 = vpack.c.b16 %v737, %v733
        %v942 = vpack.c.b16 %v742, %v738
        %v943 = vpack.c.b16 %v743, %v739
        %v944 = vpack.c.b16 %v744, %v740
        %v945 = vpack.c.b16 %v745, %v741
        %v946 = vpack.c.b16 %v750, %v746
        %v947 = vpack.c.b16 %v751, %v747
        %v948 = vpack.c.b16 %v752, %v748
        %v949 = vpack.c.b16 %v753, %v749
        %v950 = vpack.c.b16 %v758, %v754
        %v951 = vpack.c.b16 %v759, %v755
        %v952 = vpack.c.b16 %v760, %v756
        %v953 = vpack.c.b16 %v761, %v757
        %v954 = vpack.c.b16 %v766, %v762
        %v955 = vpack.c.b16 %v767, %v763
        %v956 = vpack.c.b16 %v768, %v764
        %v957 = vpack.c.b16 %v769, %v765
        %v958 = vpack.c.b16 %v774, %v770
        %v959 = vpack.c.b16 %v775, %v771
        %v960 = vpack.c.b16 %v776, %v772
        %v961 = vpack.c.b16 %v777, %v773
        %v962 = vpack.c.b16 %v782, %v778
        %v963 = vpack.c.b16 %v783, %v779
        %v964 = vpack.c.b16 %v784, %v780
        %v965 = vpack.c.b16 %v785, %v781
        %v966 = vpack.c.b16 %v790, %v786
        %v967 = vpack.c.b16 %v791, %v787
        %v968 = vpack.c.b16 %v792, %v788
        %v969 = vpack.c.b16 %v793, %v789
        %v970 = vpack.c.b16 %v798, %v794
        %v971 = vpack.c.b16 %v799, %v795
        %v972 = vpack.c.b16 %v800, %v796
        %v973 = vpack.c.b16 %v801, %v797
        %v974 = vpack.c.b16 %v806, %v802
        %v975 = vpack.c.b16 %v807, %v803
        %v976 = vpack.c.b16 %v808, %v804
        %v977 = vpack.c.b16 %v809, %v805
        %v978 = vpack.c.b16 %v814, %v810
        %v979 = vpack.c.b16 %v815, %v811
        %v980 = vpack.c.b16 %v816, %v812
        %v981 = vpack.c.b16 %v817, %v813
        %v982 = vpack.c.b16 %v822, %v818
        %v983 = vpack.c.b16 %v823, %v819
        %v984 = vpack.c.b16 %v824, %v820
        %v985 = vpack.c.b16 %v825, %v821
        %v986 = vpack.c.b16 %v830, %v826
        %v987 = vpack.c.b16 %v831, %v827
        %v988 = vpack.c.b16 %v832, %v828
        %v989 = vpack.c.b16 %v833, %v829
        %v990 = vpack.c.b16 %v838, %v834
        %v991 = vpack.c.b16 %v839, %v835
        %v992 = vpack.c.b16 %v840, %v836
        %v993 = vpack.c.b16 %v841, %v837
        %v994 = vpack.c.b16 %v846, %v842
        %v995 = vpack.c.b16 %v847, %v843
        %v996 = vpack.c.b16 %v848, %v844
        %v997 = vpack.c.b16 %v849, %v845
        %v998 = vpack.c.b16 %v854, %v850
        %v999 = vpack.c.b16 %v855, %v851
        %v1000 = vpack.c.b16 %v856, %v852
        %v1001 = vpack.c.b16 %v857, %v853
        %v1002 = vpack.c.b16 %v862, %v858
        %v1003 = vpack.c.b16 %v863, %v859
        %v1004 = vpack.c.b16 %v864, %v860
        %v1005 = vpack.c.b16 %v865, %v861
        %v1006 = vpack.c.b16 %v870, %v866
        %v1007 = vpack.c.b16 %v871, %v867
        %v1008 = vpack.c.b16 %v872, %v868
        %v1009 = vpack.c.b16 %v873, %v869
        %v1010 = vpack.c.b16 %v878, %v874
        %v1011 = vpack.c.b16 %v879, %v875
        %v1012 = vpack.c.b16 %v880, %v876
        %v1013 = vpack.c.b16 %v881, %v877
        %v1014 = vpack.c.b16 %v886, %v882
        %v1015 = vpack.c.b16 %v887, %v883
        %v1016 = vpack.c.b16 %v888, %v884
        %v1017 = vpack.c.b16 %v889, %v885
        %1146 = vmatprep.subr.bf16.mxu0 %v891
        %1147 = vmatpush1.bf16.msra.mxu0 %v890
        %1148 = vmatprep.subr.bf16.mxu0 %v895
        %1149 = vmatpush1.bf16.msra.mxu0 %v894
        %1150 = vmatprep.subr.bf16.mxu0 %v899
        %1151 = vmatpush1.bf16.msra.mxu0 %v898
        %1152 = vmatprep.subr.bf16.mxu0 %v903
        %1153 = vmatpush1.bf16.msra.mxu0 %v902
        %1154 = vmatprep.subr.bf16.mxu0 %v907
        %1155 = vmatpush1.bf16.msra.mxu0 %v906
        %1156 = vmatprep.subr.bf16.mxu0 %v911
        %1157 = vmatpush1.bf16.msra.mxu0 %v910
        %1158 = vmatprep.subr.bf16.mxu0 %v915
        %1159 = vmatpush1.bf16.msra.mxu0 %v914
        %1160 = vmatprep.subr.bf16.mxu0 %v919
        %1161 = vmatpush1.bf16.msra.mxu0 %v918
        %1162 = vmatprep.subr.bf16.mxu0 %v923
        %1163 = vmatpush1.bf16.msra.mxu0 %v922
        %1164 = vmatprep.subr.bf16.mxu0 %v927
        %1165 = vmatpush1.bf16.msra.mxu0 %v926
        %1166 = vmatprep.subr.bf16.mxu0 %v931
        %1167 = vmatpush1.bf16.msra.mxu0 %v930
        %1168 = vmatprep.subr.bf16.mxu0 %v935
        %1169 = vmatpush1.bf16.msra.mxu0 %v934
        %1170 = vmatprep.subr.bf16.mxu0 %v939
        %1171 = vmatpush1.bf16.msra.mxu0 %v938
        %1172 = vmatprep.subr.bf16.mxu0 %v943
        %1173 = vmatpush1.bf16.msra.mxu0 %v942
        %1174 = vmatprep.subr.bf16.mxu0 %v947
        %1175 = vmatpush1.bf16.msra.mxu0 %v946
        %1176 = vmatprep.subr.bf16.mxu0 %v951
        %1177 = vmatpush1.bf16.msra.mxu0 %v950
        %1178 = vmatprep.mubr.bf16.mxu0 %v499
        %1179 = vmatmul.mubr.bf16.gmra.mrb[0].mxu0 %v498
        %v1180 = vpop.f32.mrb[0].mxu0
        %v1181 = vadd.f32 0.0, %v1180
        %v1182 = vpop.f32.mrb[0].mxu0
        %v1183 = vadd.f32 0.0, %v1182
        %v1184 = vpop.f32.mrb[0].mxu0
        %v1185 = vpop.f32.mrb[0].mxu0
        %1186 = vdwg.mxu0
        %1187 = vmatprep.subr.bf16.mxu0 %v955
        %1188 = vmatpush1.bf16.msra.mxu0 %v954
        %1189 = vmatprep.subr.bf16.mxu0 %v959
        %1190 = vmatpush1.bf16.msra.mxu0 %v958
        %1191 = vmatprep.subr.bf16.mxu0 %v963
        %1192 = vmatpush1.bf16.msra.mxu0 %v962
        %1193 = vmatprep.subr.bf16.mxu0 %v967
        %1194 = vmatpush1.bf16.msra.mxu0 %v966
        %1195 = vmatprep.subr.bf16.mxu0 %v971
        %1196 = vmatpush1.bf16.msra.mxu0 %v970
        %1197 = vmatprep.subr.bf16.mxu0 %v975
        %1198 = vmatpush1.bf16.msra.mxu0 %v974
        %1199 = vmatprep.subr.bf16.mxu0 %v979
        %1200 = vmatpush1.bf16.msra.mxu0 %v978
        %1201 = vmatprep.subr.bf16.mxu0 %v983
        %1202 = vmatpush1.bf16.msra.mxu0 %v982
        %1203 = vmatprep.subr.bf16.mxu0 %v987
        %1204 = vmatpush1.bf16.msra.mxu0 %v986
        %1205 = vmatprep.subr.bf16.mxu0 %v991
        %1206 = vmatpush1.bf16.msra.mxu0 %v990
        %1207 = vmatprep.subr.bf16.mxu0 %v995
        %1208 = vmatpush1.bf16.msra.mxu0 %v994
        %1209 = vmatprep.subr.bf16.mxu0 %v999
        %1210 = vmatpush1.bf16.msra.mxu0 %v998
        %1211 = vmatprep.subr.bf16.mxu0 %v1003
        %1212 = vmatpush1.bf16.msra.mxu0 %v1002
        %1213 = vmatprep.subr.bf16.mxu0 %v1007
        %1214 = vmatpush1.bf16.msra.mxu0 %v1006
        %1215 = vmatprep.subr.bf16.mxu0 %v1011
        %1216 = vmatpush1.bf16.msra.mxu0 %v1010
        %1217 = vmatprep.subr.bf16.mxu0 %v1015
        %1218 = vmatpush1.bf16.msra.mxu0 %v1014
        %1219 = vmatprep.mubr.bf16.mxu0 %v501
        %1220 = vmatmul.mubr.bf16.gmra.mrb[0].mxu0 %v500
        %v1221 = vpop.f32.mrb[0].mxu0
        %v1222 = vadd.f32 %v1181, %v1221
        %v1223 = vpop.f32.mrb[0].mxu0
        %v1224 = vadd.f32 %v1183, %v1223
        %v1225 = vpop.f32.mrb[0].mxu0
        %v1226 = vpop.f32.mrb[0].mxu0
        %1227 = vdwg.mxu0
        %1228 = vmatprep.subr.bf16.mxu0 %v893
        %1229 = vmatpush1.bf16.msra.mxu0 %v892
        %1230 = vmatprep.subr.bf16.mxu0 %v897
        %1231 = vmatpush1.bf16.msra.mxu0 %v896
        %1232 = vmatprep.subr.bf16.mxu0 %v901
        %1233 = vmatpush1.bf16.msra.mxu0 %v900
        %1234 = vmatprep.subr.bf16.mxu0 %v905
        %1235 = vmatpush1.bf16.msra.mxu0 %v904
        %1236 = vmatprep.subr.bf16.mxu0 %v909
        %1237 = vmatpush1.bf16.msra.mxu0 %v908
        %1238 = vmatprep.subr.bf16.mxu0 %v913
        %1239 = vmatpush1.bf16.msra.mxu0 %v912
        %1240 = vmatprep.subr.bf16.mxu0 %v917
        %1241 = vmatpush1.bf16.msra.mxu0 %v916
        %1242 = vmatprep.subr.bf16.mxu0 %v921
        %1243 = vmatpush1.bf16.msra.mxu0 %v920
        %1244 = vmatprep.subr.bf16.mxu0 %v925
        %1245 = vmatpush1.bf16.msra.mxu0 %v924
        %1246 = vmatprep.subr.bf16.mxu0 %v929
        %1247 = vmatpush1.bf16.msra.mxu0 %v928
        %1248 = vmatprep.subr.bf16.mxu0 %v933
        %1249 = vmatpush1.bf16.msra.mxu0 %v932
        %1250 = vmatprep.subr.bf16.mxu0 %v937
        %1251 = vmatpush1.bf16.msra.mxu0 %v936
        %1252 = vmatprep.subr.bf16.mxu0 %v941
        %1253 = vmatpush1.bf16.msra.mxu0 %v940
        %1254 = vmatprep.subr.bf16.mxu0 %v945
        %1255 = vmatpush1.bf16.msra.mxu0 %v944
        %1256 = vmatprep.subr.bf16.mxu0 %v949
        %1257 = vmatpush1.bf16.msra.mxu0 %v948
        %1258 = vmatprep.subr.bf16.mxu0 %v953
        %1259 = vmatpush1.bf16.msra.mxu0 %v952
        %1260 = vmatprep.mubr.bf16.mxu0 %v499
        %1261 = vmatmul.mubr.bf16.gmra.mrb[0].mxu0 %v498
        %v1262 = vpop.f32.mrb[0].mxu0
        %v1263 = vadd.f32 0.0, %v1262
        %v1264 = vpop.f32.mrb[0].mxu0
        %v1265 = vadd.f32 0.0, %v1264
        %v1266 = vpop.f32.mrb[0].mxu0
        %v1267 = vpop.f32.mrb[0].mxu0
        %1268 = vdwg.mxu0
        %1269 = vmatprep.subr.bf16.mxu0 %v957
        %1270 = vmatpush1.bf16.msra.mxu0 %v956
        %1271 = vmatprep.subr.bf16.mxu0 %v961
        %1272 = vmatpush1.bf16.msra.mxu0 %v960
        %1273 = vmatprep.subr.bf16.mxu0 %v965
        %1274 = vmatpush1.bf16.msra.mxu0 %v964
        %1275 = vmatprep.subr.bf16.mxu0 %v969
        %1276 = vmatpush1.bf16.msra.mxu0 %v968
        %1277 = vmatprep.subr.bf16.mxu0 %v973
        %1278 = vmatpush1.bf16.msra.mxu0 %v972
        %1279 = vmatprep.subr.bf16.mxu0 %v977
        %1280 = vmatpush1.bf16.msra.mxu0 %v976
        %1281 = vmatprep.subr.bf16.mxu0 %v981
        %1282 = vmatpush1.bf16.msra.mxu0 %v980
        %1283 = vmatprep.subr.bf16.mxu0 %v985
        %1284 = vmatpush1.bf16.msra.mxu0 %v984
        %1285 = vmatprep.subr.bf16.mxu0 %v989
        %1286 = vmatpush1.bf16.msra.mxu0 %v988
        %1287 = vmatprep.subr.bf16.mxu0 %v993
        %1288 = vmatpush1.bf16.msra.mxu0 %v992
        %1289 = vmatprep.subr.bf16.mxu0 %v997
        %1290 = vmatpush1.bf16.msra.mxu0 %v996
        %1291 = vmatprep.subr.bf16.mxu0 %v1001
        %1292 = vmatpush1.bf16.msra.mxu0 %v1000
        %1293 = vmatprep.subr.bf16.mxu0 %v1005
        %1294 = vmatpush1.bf16.msra.mxu0 %v1004
        %1295 = vmatprep.subr.bf16.mxu0 %v1009
        %1296 = vmatpush1.bf16.msra.mxu0 %v1008
        %1297 = vmatprep.subr.bf16.mxu0 %v1013
        %1298 = vmatpush1.bf16.msra.mxu0 %v1012
        %1299 = vmatprep.subr.bf16.mxu0 %v1017
        %1300 = vmatpush1.bf16.msra.mxu0 %v1016
        %1301 = vmatprep.mubr.bf16.mxu0 %v501
        %1302 = vmatmul.mubr.bf16.gmra.mrb[0].mxu0 %v500
        %v1303 = vpop.f32.mrb[0].mxu0
        %v1304 = vadd.f32 %v1263, %v1303
        %v1305 = vpop.f32.mrb[0].mxu0
        %v1306 = vadd.f32 %v1265, %v1305
        %v1307 = vpop.f32.mrb[0].mxu0
        %v1308 = vpop.f32.mrb[0].mxu0
        %1309 = vdwg.mxu0
        %v1310 = vadd.f32 %v358, %v1222
        %v1311 = vadd.f32 %v359, %v1224
        %v1312 = vadd.f32 %v360, %v1304
        %v1313 = vadd.f32 %v361, %v1306
        %1314 = vst [vmem:[#allocation2] sm:$0xff] %v1310
        %1315 = vst [vmem:[#allocation2 + $0x8] sm:$0xff] %v1311
        %1316 = vst [vmem:[#allocation2 + $0x10] sm:$0xff] %v1312
        %1317 = vst [vmem:[#allocation2 + $0x18] sm:$0xff] %v1313
        %p1318 = scmp.eq.s32.totalorder %s32, 1
        // Predicated region
        $region57: #{tpu_custom_call.1} parent=35 // pred_check
          %p1319 = pneg %p1318
        $region58: #{tpu_custom_call.1} parent=35 // pred_check_branch
          %1321 = sbr.rel (%p1319) target = $region60
        $region59: #{tpu_custom_call.1} parent=35 // pred_region
          %v1322 = vld [vmem:[%s295] sm:$0xff]
          %v1323 = vld [vmem:[%s295 + $0x8] sm:$0xff]
          %v1324 = vld [vmem:[%s295 + $0x10] sm:$0xff]
          %v1325 = vld [vmem:[%s295 + $0x18] sm:$0xff]
          %v1326 = vld [vmem:[%s304] sm:$0xf]
          %v1327 = vld [vmem:[#allocation2] sm:$0xff]
          %v1328 = vld [vmem:[#allocation2 + $0x8] sm:$0xff]
          %v1329 = vld [vmem:[#allocation2 + $0x10] sm:$0xff]
          %v1330 = vld [vmem:[#allocation2 + $0x18] sm:$0xff]
          %v1331 = vmul.f32 %v1327, %v1322
          %v1332 = vmul.f32 %v1328, %v1323
          %v1333 = vmul.f32 %v1329, %v1324
          %v1334 = vmul.f32 %v1330, %v1325
          %v1336 = vlaneseq
          %v1337 = vshrl.u32 %v1336, 7
          %v1338 = vsub.s32 0, %v1337
          %v1339 = vrot.slane %v1326, %v1338
          %v1340 = vlaneseq
          %v1341 = vshrl.u32 %v1340, 7
          %v1342 = vsub.s32 1, %v1341
          %v1343 = vrot.slane %v1326, %v1342
          %v1344 = vlaneseq
          %v1345 = vshrl.u32 %v1344, 7
          %v1346 = vsub.s32 2, %v1345
          %v1347 = vrot.slane %v1326, %v1346
          %v1348 = vlaneseq
          %v1349 = vshrl.u32 %v1348, 7
          %v1350 = vsub.s32 3, %v1349
          %v1351 = vrot.slane %v1326, %v1350
          %v1356 = vmul.f32 %v1331, %v1339
          %v1357 = vmul.f32 %v1332, %v1343
          %v1358 = vmul.f32 %v1333, %v1347
          %v1359 = vmul.f32 %v1334, %v1351
          %v1360 = vsub.f32 1.0, %v1326
          %v1362 = vlaneseq
          %v1363 = vshrl.u32 %v1362, 7
          %v1364 = vsub.s32 0, %v1363
          %v1365 = vrot.slane %v1360, %v1364
          %v1366 = vlaneseq
          %v1367 = vshrl.u32 %v1366, 7
          %v1368 = vsub.s32 1, %v1367
          %v1369 = vrot.slane %v1360, %v1368
          %v1370 = vlaneseq
          %v1371 = vshrl.u32 %v1370, 7
          %v1372 = vsub.s32 2, %v1371
          %v1373 = vrot.slane %v1360, %v1372
          %v1374 = vlaneseq
          %v1375 = vshrl.u32 %v1374, 7
          %v1376 = vsub.s32 3, %v1375
          %v1377 = vrot.slane %v1360, %v1376
          %v1382 = vmul.f32 %v1365, %v1322
          %v1383 = vmul.f32 %v1369, %v1323
          %v1384 = vmul.f32 %v1373, %v1324
          %v1385 = vmul.f32 %v1377, %v1325
          %v1386 = vadd.f32 %v1356, %v1382
          %v1387 = vadd.f32 %v1357, %v1383
          %v1388 = vadd.f32 %v1358, %v1384
          %v1389 = vadd.f32 %v1359, %v1385
          %1390 = vst [vmem:[%s343] sm:$0xff] %v1386
          %1391 = vst [vmem:[%s343 + $0x8] sm:$0xff] %v1387
          %1392 = vst [vmem:[%s343 + $0x10] sm:$0xff] %v1388
          %1393 = vst [vmem:[%s343 + $0x18] sm:$0xff] %v1389
        $region60: #{tpu_custom_call.1} parent=35 // pred_fallthru
          _
        %s1394 = sand.u32 %s153, 1
        %s1395 = scalar_lea.sflag [#allocation5], %s1394
        %s1396 = sand.u32 %s153, 1
        %s1397 = smul.addr %s1396, 32
        %s1398 = scalar_lea.vmem [#allocation11], %s1397
        // Predicated region
        $region61: #{tpu_custom_call.1} parent=35 // pred_check
          %p1399 = pneg %p163
        $region62: #{tpu_custom_call.1} parent=35 // pred_check_branch
          %1401 = sbr.rel (%p1399) target = $region64
        $region63: #{tpu_custom_call.1} parent=35 // pred_region
          %s1402 = smul.u32 4, %s31
          %s1404 = ssub.s32 512, 512
          %1405 = vsyncadd %s1395, %s1404
          %s1406 = smul.addr %s1402, 128
          %s1407 = scalar_lea.hbm %s4, %s1406
          %s1409 = sshll.u32 %s1398, 4
          %s1410 = int_to_ptr.vmem [resolvable:$true] %s1409
          %1412 = dma.vmem_to_hbm [thread:$0]  %s1410, 512, %s1407, %s1395
        $region64: #{tpu_custom_call.1} parent=35 // pred_fallthru
          _
      $region36: #{tpu_custom_call.1} parent=5 // pred_fallthru
        _
      %p1413 = scmp.le.s32.totalorder 2, %s22
      // Predicated region
      $region65: #{tpu_custom_call.1} parent=5 // pred_check
        %p1414 = pneg %p1413
      $region66: #{tpu_custom_call.1} parent=5 // pred_check_branch
        %1416 = sbr.rel (%p1414) target = $region68
      $region67: #{tpu_custom_call.1} parent=5 // pred_region
        %s1417 = ssub.s32 %s22, 2
        // Predicated region
        $region69: #{tpu_custom_call.1} parent=67 // pred_check
          %p1418 = pneg %p169
        $region70: #{tpu_custom_call.1} parent=67 // pred_check_branch
          %1420 = sbr.rel (%p1418) target = $region72
        $region71: #{tpu_custom_call.1} parent=67 // pred_region
          %s1421 = sand.u32 %s154, 1
          %s1422 = scalar_lea.sflag [#allocation5], %s1421
          %s1423 = sand.u32 %s154, 1
          %s1424 = smul.addr %s1423, 32
          %s1425 = scalar_lea.vmem [#allocation11], %s1424
          %1426 = dma.done %s1422, 512
        $region72: #{tpu_custom_call.1} parent=67 // pred_fallthru
          _
      $region68: #{tpu_custom_call.1} parent=5 // pred_fallthru
        _
    $region6: #{tpu_custom_call.1} parent=1 // loop_footer
      %s26 = sadd.s32 1, %s22
    $region7: #{tpu_custom_call.1} parent=1 // loop_footer_branch
      %21 = sbr.rel target = $region3
    $region8: #{tpu_custom_call.1} parent=1 // loop_exit
      _
    %1427 = vsyncpa [#allocation4], 1
    %s1428 = scalar_lea.sflag [#allocation4], 1
    %1429 = vsyncpa %s1428, 1
    %1430 = vsyncpa [#allocation7], 1
    %s1431 = scalar_lea.sflag [#allocation7], 1
    %1432 = vsyncpa %s1431, 1
    %1433 = vsyncpa [#allocation10], 1
    %s1434 = scalar_lea.sflag [#allocation10], 1
    %1435 = vsyncpa %s1434, 1
    %1436 = vsyncpa [#allocation5], 1
    %s1437 = scalar_lea.sflag [#allocation5], 1
    %1438 = vsyncpa %s1437, 1

</llo_original>
